<compile_context>
chip_gen: v7x
topology: tpu7x:2x2x1
jax: 0.10.0
libtpu: 0.0.40
codegen_flags: <defaults>
</compile_context>

<pallas_src>
import jax
import jax.numpy as jnp
from jax import lax
from jax.experimental import pallas as pl
from jax.experimental.pallas import tpu as pltpu


def _round_up(a, b):
    return (a + b - 1) // b * b


def _swap_halves(v, mh):
    # [first | second] -> [second | first] along the lane (last) axis.
    return pltpu.roll(v, shift=mh, axis=v.ndim - 1)


def _spectral_cond_kernel(s_ref, x_ref, w_ref, o_ref):
    """One (batch-tile, cout-tile) block of the conditional spectral conv.

    Packed complex lane layout (width Mp2, Mh = Mp2 // 2):
      lanes [0, M)       -> real part
      lanes [Mh, Mh + M) -> imag part
      remaining lanes    -> zero padding (stays zero through all ops)

    s_ref: (Tb, Mp2)        packed freq embedding  [er | ei]
    x_ref: (Cin, Tb, Mp2)   packed rfft modes      [xr | xi]
    w_ref: (Cin, Tc, Mp2)   packed spectral weight [wr | wi]
    o_ref: (Tb, Tc, Mp2)    packed output modes    [or | oi]
    """
    cin = x_ref.shape[0]
    mp2 = x_ref.shape[-1]
    mh = mp2 // 2

    lane = lax.broadcasted_iota(jnp.int32, (1, 1, mp2), 2)
    first_half = lane < mh                          # hoisted out of the loop

    # Accumulate in place in the output's VMEM tile: no loop-carried vreg
    # accumulators -> no spill traffic on the load/store slots.
    o_ref[...] = jnp.zeros_like(o_ref)

    def body(i, carry):
        x = x_ref[i]                                # (Tb, Mp2)  [xr | xi]
        w = w_ref[i]                                # (Tc, Mp2)  [wr | wi]
        xs = _swap_halves(x, mh)                    # [xi | xr]
        a = x[:, None, :] * w[None, :, :]           # [xr*wr | xi*wi]
        c = xs[:, None, :] * w[None, :, :]          # [xi*wr | xr*wi]
        a_sw = _swap_halves(a, mh)                  # [xi*wi | xr*wr]   (XLU)
        c_sw = _swap_halves(c, mh)                  # [xr*wi | xi*wr]   (XLU)
        # real: xr*wr - xi*wi     imag: xr*wi + xi*wr
        o_ref[...] += jnp.where(first_half, a - a_sw, c + c_sw)
        return carry

    if cin <= 8:
        # Tiny channel counts: straight-line code is cheapest.
        for i in range(cin):
            body(i, 0)
    else:
        # Rolled loop (acc lives in o_ref, so no giant live carry); light
        # unroll keeps the LLO scheduler fed without blowing up code size.
        lax.fori_loop(0, cin, body, 0, unroll=2)

    # Scale the accumulated modes by the conditional frequency embedding
    # (complex multiply).  Applied once per output tile instead of per input
    # channel -- mathematically identical to scaling the input.
    e = s_ref[...]                                  # (Tb, Mp2)  [er | ei]
    es = _swap_halves(e, mh)                        # [ei | er]
    e = e[:, None, :]
    es = es[:, None, :]
    o = o_ref[...]
    o_sw = _swap_halves(o, mh)                      # [oi | or]
    # real: or*er - oi*ei      imag: or*ei + oi*er
    o_ref[...] = jnp.where(first_half, o * e - o_sw * es, o_sw * e + o * es)


def _choose_tiles(B, Cin, Cout, Mp2):
    """Pick (Tb, Bp, Tc, Cp): tile sizes and padded extents."""
    # Cout tile: <= 16 rows so one (Tb, Tc, Mp2) temporary stays modest, and
    # production channel widths give a second parallel grid axis (>= 2 steps
    # for v7x's two TensorCores).
    if Cout <= 16:
        Tc, Cp = Cout, Cout
    else:
        Tc = 16
        Cp = _round_up(Cout, Tc)

    if B <= 8:
        return B, B, Tc, Cp

    # Batch tile: multiple of 8, as large as fits (a) a ~256 KiB cap on one
    # (Tb, Tc, Mp2) f32 temporary and (b) a ~24 MiB per-step working set
    # (double-buffered x / emb / out tiles + weight block), comfortably under
    # the 48 MiB scoped-VMEM limit requested below (valid on v5e/v6e/v7x).
    cap = max(8, ((256 * 1024) // (Tc * Mp2 * 4)) // 8 * 8)
    Tb = min(64, cap, _round_up(B, 8))

    def vmem_need(tb):
        return 4 * (2 * Cin * tb * Mp2 + 2 * tb * Mp2
                    + 2 * tb * Tc * Mp2 + 2 * Cin * Tc * Mp2)

    while Tb > 8 and vmem_need(Tb) > 24 * 1024 * 1024:
        Tb -= 8
    return Tb, _round_up(B, Tb), Tc, Cp


def spectral_conv1d_cond(x, emb, params):
    """x: (B, in_channels, N) float32, emb: (B, cond_channels) float32."""
    B, Cin, N = x.shape
    M = params["modes1"]
    Cout = params["out_channels"]

    # FreqLinear stays in plain JAX (tiny (B,Ccond)@(Ccond,2M) GEMM).
    er = emb @ params["freq_w_r"] + params["freq_b_r"]             # (B, M)
    ei = emb @ params["freq_w_i"] + params["freq_b_i"]

    # TODO(synk): rFFT / irFFT have no Pallas TPU equivalent; done in plain JAX.
    x_ft = jnp.fft.rfft(x.astype(jnp.float32), axis=-1)[:, :, :M]  # (B,Cin,M) c64
    x_ft = jnp.transpose(x_ft, (1, 0, 2))                          # (Cin,B,M)

    # Packed lane layout: one block of width Mp2 = roundup(2M, 128); Mh is kept
    # lane-tile aligned when Mp2 > 128 so the in-kernel half swap is a cheap
    # vreg rotate.
    Mp2 = 128 if 2 * M <= 128 else _round_up(2 * M, 256)
    Mh = Mp2 // 2

    Tb, Bp, Tc, Cp = _choose_tiles(B, Cin, Cout, Mp2)
    nb, nc = Bp // Tb, Cp // Tc

    # Each packed operand: ONE zeros buffer + two .at[].set (fused by XLA) --
    # no pad -> concat -> transpose chain over the mode data.  Batch / Cout
    # padding rows are zero, contribute zero output, and are sliced off below.
    x_pk = jnp.zeros((Cin, Bp, Mp2), jnp.float32)
    x_pk = x_pk.at[:, :B, :M].set(jnp.real(x_ft))
    x_pk = x_pk.at[:, :B, Mh:Mh + M].set(jnp.imag(x_ft))

    w_pk = jnp.zeros((Cin, Cp, Mp2), jnp.float32)
    w_pk = w_pk.at[:, :Cout, :M].set(params["w1_r"])
    w_pk = w_pk.at[:, :Cout, Mh:Mh + M].set(params["w1_i"])

    s_pk = jnp.zeros((Bp, Mp2), jnp.float32)
    s_pk = s_pk.at[:B, :M].set(er)
    s_pk = s_pk.at[:B, Mh:Mh + M].set(ei)

    # Weight block: streamed (double-buffered) when Cout is tiled; when it is
    # resident (index map constant across the grid) and large, a single buffer
    # halves its VMEM footprint.
    w_kwargs = {}
    if nc == 1 and Cin * Cp * Mp2 * 4 >= (2 << 20):
        w_kwargs = dict(pipeline_mode=pl.Buffered(1))
    w_spec = pl.BlockSpec((Cin, Tc, Mp2), lambda b, c: (0, c, 0), **w_kwargs)

    cost = pl.CostEstimate(
        flops=8 * B * Cin * Cout * M + 6 * B * Cout * M,
        transcendentals=0,
        bytes_accessed=4 * (s_pk.size + x_pk.size + w_pk.size + Bp * Cp * Mp2))

    out = pl.pallas_call(
        _spectral_cond_kernel,
        out_shape=jax.ShapeDtypeStruct((Bp, Cp, Mp2), jnp.float32),
        grid_spec=pltpu.PrefetchScalarGridSpec(
            num_scalar_prefetch=0,
            grid=(nb, nc),                      # cout axis innermost: x / emb
            in_specs=[                          # tiles stay resident per batch
                pl.BlockSpec((Tb, Mp2), lambda b, c: (b, 0)),
                pl.BlockSpec((Cin, Tb, Mp2), lambda b, c: (0, b, 0)),
                w_spec,
            ],
            out_specs=pl.BlockSpec((Tb, Tc, Mp2), lambda b, c: (b, c, 0)),
        ),
        compiler_params=pltpu.CompilerParams(
            dimension_semantics=("parallel", "parallel"),
            vmem_limit_bytes=48 * 1024 * 1024),
        cost_estimate=cost,
    )(s_pk, x_pk, w_pk)

    out_r = out[:B, :Cout, :M]
    out_i = out[:B, :Cout, Mh:Mh + M]
    out_ft = jnp.zeros((B, Cout, N // 2 + 1), jnp.complex64)
    out_ft = out_ft.at[:, :, :M].set(out_r + 1j * out_i)
    return jnp.fft.irfft(out_ft, n=N, axis=-1)


def make_params(key, in_channels, out_channels, cond_channels, modes1):
    k1, k2, k3 = jax.random.split(key, 3)
    scale = 1.0 / (in_channels * out_channels)
    # weights1: complex, uniform [0,1) real & imag (torch.rand with cfloat dtype)
    w1_r = scale * jax.random.uniform(k1, (in_channels, out_channels, modes1), jnp.float32)
    w1_i = scale * jax.random.uniform(k2, (in_channels, out_channels, modes1), jnp.float32)
    # FreqLinear: weights (cond_channels, 2*modes1) ~ scale_f * N(0,1), bias zeros
    scale_f = 1.0 / (cond_channels + 2 * modes1)
    wf = scale_f * jax.random.normal(k3, (cond_channels, 2 * modes1), jnp.float32)
    bf = jnp.zeros((1, 2 * modes1), jnp.float32)
    # view_as_complex on reshape(B, modes1, 2): even cols -> real, odd cols -> imag
    return {
        "modes1": modes1,
        "out_channels": out_channels,
        "w1_r": w1_r,
        "w1_i": w1_i,
        "freq_w_r": wf[:, 0::2],
        "freq_w_i": wf[:, 1::2],
        "freq_b_r": bf[:, 0::2],
        "freq_b_i": bf[:, 1::2],
    }


def reference_jax(x, emb, params):
    """Pure-JAX reference mirroring the PyTorch module."""
    M = params["modes1"]
    Cout = params["out_channels"]
    B, Cin, N = x.shape
    er = emb @ params["freq_w_r"] + params["freq_b_r"]
    ei = emb @ params["freq_w_i"] + params["freq_b_i"]
    emb_c = er + 1j * ei                                         # (B, M)
    x_ft = jnp.fft.rfft(x, axis=-1)
    w1 = params["w1_r"] + 1j * params["w1_i"]
    scaled = x_ft[:, :, :M] * emb_c[:, None, :]
    out_modes = jnp.einsum("bix,iox->box", scaled, w1)
    out_ft = jnp.zeros((B, Cout, N // 2 + 1), jnp.complex64)
    out_ft = out_ft.at[:, :, :M].set(out_modes)
    return jnp.fft.irfft(out_ft, n=N, axis=-1)


if __name__ == "__main__":
    key = jax.random.PRNGKey(0)
    kx, kemb, kp = jax.random.split(key, 3)

    B, Cin, Cout, Ccond, N, M = 2, 4, 4, 3, 16, 6
    x = jax.random.normal(kx, (B, Cin, N), jnp.float32)
    emb = jax.random.normal(kemb, (B, Ccond), jnp.float32)
    params = make_params(kp, Cin, Cout, Ccond, M)

    out = jax.block_until_ready(spectral_conv1d_cond(x, emb, params))
    ref = jax.block_until_ready(reference_jax(x, emb, params))
    assert out.shape == (B, Cout, N)
    assert jnp.allclose(out, ref, rtol=1e-4, atol=1e-5), "mismatch vs reference"
    print("KERNEL_OK")
</pallas_src>

<mosaic_0001>
module attributes {stable_mosaic.version = 11 : i64} {
  func.func @_spectral_cond_kernel(%arg0: i32, %arg1: i32, %arg2: memref<2x128xf32, #tpu.memory_space<vmem>>, %arg3: memref<4x2x128xf32, #tpu.memory_space<vmem>>, %arg4: memref<4x4x128xf32, #tpu.memory_space<vmem>>, %arg5: memref<2x4x128xf32, #tpu.memory_space<vmem>>) attributes {dimension_semantics = [#tpu.dimension_semantics<parallel>, #tpu.dimension_semantics<parallel>], iteration_bounds = array<i64: 1, 1>, scalar_prefetch = 0 : i64, scratch_operands = 0 : i64, tpu.core_type = #tpu.core_type<tc>, window_params = [{transform_indices = @transform_0, window_bounds = array<i64: 2, 128>}, {transform_indices = @transform_1, window_bounds = array<i64: 4, 2, 128>}, {transform_indices = @transform_2, window_bounds = array<i64: 4, 4, 128>}, {transform_indices = @transform_3, window_bounds = array<i64: 2, 4, 128>}]} {
    %0 = tpu.iota {dimensions = array<i32: 2>} : vector<1x1x128xi32>
    %c64_i32 = arith.constant 64 : i32
    %1 = vector.broadcast %c64_i32 : i32 to vector<1x1x128xi32>
    %2 = arith.cmpi slt, %0, %1 : vector<1x1x128xi32>
    %cst = arith.constant 0.000000e+00 : f32
    %3 = vector.broadcast %cst : f32 to vector<2x4x128xf32>
    %c0 = arith.constant 0 : index
    %c0_0 = arith.constant 0 : index
    %c0_1 = arith.constant 0 : index
    %4 = vector.load %arg5[%c0, %c0_0, %c0_1] : memref<2x4x128xf32, #tpu.memory_space<vmem>>, vector<2x4x128xf32>
    tpu.vector_store %arg5[%c0, %c0_0, %c0_1], %3 {strides = array<i32>} : memref<2x4x128xf32, #tpu.memory_space<vmem>>, vector<2x4x128xf32>,
    %c0_2 = arith.constant 0 : index
    %c0_3 = arith.constant 0 : index
    %c0_4 = arith.constant 0 : index
    %5 = vector.load %arg3[%c0_2, %c0_3, %c0_4] : memref<4x2x128xf32, #tpu.memory_space<vmem>>, vector<1x2x128xf32>
    %6 = vector.shape_cast %5 : vector<1x2x128xf32> to vector<2x128xf32>
    %c0_5 = arith.constant 0 : index
    %c0_6 = arith.constant 0 : index
    %c0_7 = arith.constant 0 : index
    %7 = vector.load %arg4[%c0_5, %c0_6, %c0_7] : memref<4x4x128xf32, #tpu.memory_space<vmem>>, vector<1x4x128xf32>
    %8 = vector.shape_cast %7 : vector<1x4x128xf32> to vector<4x128xf32>
    %c64_i32_8 = arith.constant 64 : i32
    %9 = tpu.dynamic_rotate %6 by %c64_i32_8 dim 1 : vector<2x128xf32>, i32 -> vector<2x128xf32>
    %10 = vector.shape_cast %6 : vector<2x128xf32> to vector<2x1x128xf32>
    %11 = vector.shape_cast %8 : vector<4x128xf32> to vector<1x4x128xf32>
    %12 = vector.broadcast %10 : vector<2x1x128xf32> to vector<2x4x128xf32>
    %13 = vector.broadcast %11 : vector<1x4x128xf32> to vector<2x4x128xf32>
    %14 = arith.mulf %12, %13 : vector<2x4x128xf32>
    %15 = vector.shape_cast %9 : vector<2x128xf32> to vector<2x1x128xf32>
    %16 = vector.shape_cast %8 : vector<4x128xf32> to vector<1x4x128xf32>
    %17 = vector.broadcast %15 : vector<2x1x128xf32> to vector<2x4x128xf32>
    %18 = vector.broadcast %16 : vector<1x4x128xf32> to vector<2x4x128xf32>
    %19 = arith.mulf %17, %18 : vector<2x4x128xf32>
    %c64_i32_9 = arith.constant 64 : i32
    %20 = tpu.dynamic_rotate %14 by %c64_i32_9 dim 2 : vector<2x4x128xf32>, i32 -> vector<2x4x128xf32>
    %c64_i32_10 = arith.constant 64 : i32
    %21 = tpu.dynamic_rotate %19 by %c64_i32_10 dim 2 : vector<2x4x128xf32>, i32 -> vector<2x4x128xf32>
    %c0_11 = arith.constant 0 : index
    %c0_12 = arith.constant 0 : index
    %c0_13 = arith.constant 0 : index
    %22 = vector.load %arg5[%c0_11, %c0_12, %c0_13] : memref<2x4x128xf32, #tpu.memory_space<vmem>>, vector<2x4x128xf32>
    %23 = arith.subf %14, %20 : vector<2x4x128xf32>
    %24 = arith.addf %19, %21 : vector<2x4x128xf32>
    %25 = vector.shape_cast %2 : vector<1x1x128xi1> to vector<1x1x128xi1>
    %26 = vector.broadcast %25 : vector<1x1x128xi1> to vector<2x4x128xi1>
    %27 = arith.select %26, %23, %24 : vector<2x4x128xi1>, vector<2x4x128xf32>
    %28 = arith.addf %22, %27 : vector<2x4x128xf32>
    %c0_14 = arith.constant 0 : index
    %c0_15 = arith.constant 0 : index
    %c0_16 = arith.constant 0 : index
    %29 = vector.load %arg5[%c0_14, %c0_15, %c0_16] : memref<2x4x128xf32, #tpu.memory_space<vmem>>, vector<2x4x128xf32>
    tpu.vector_store %arg5[%c0_14, %c0_15, %c0_16], %28 {strides = array<i32>} : memref<2x4x128xf32, #tpu.memory_space<vmem>>, vector<2x4x128xf32>,
    %c1 = arith.constant 1 : index
    %c0_17 = arith.constant 0 : index
    %c0_18 = arith.constant 0 : index
    %30 = vector.load %arg3[%c1, %c0_17, %c0_18] : memref<4x2x128xf32, #tpu.memory_space<vmem>>, vector<1x2x128xf32>
    %31 = vector.shape_cast %30 : vector<1x2x128xf32> to vector<2x128xf32>
    %c1_19 = arith.constant 1 : index
    %c0_20 = arith.constant 0 : index
    %c0_21 = arith.constant 0 : index
    %32 = vector.load %arg4[%c1_19, %c0_20, %c0_21] : memref<4x4x128xf32, #tpu.memory_space<vmem>>, vector<1x4x128xf32>
    %33 = vector.shape_cast %32 : vector<1x4x128xf32> to vector<4x128xf32>
    %c64_i32_22 = arith.constant 64 : i32
    %34 = tpu.dynamic_rotate %31 by %c64_i32_22 dim 1 : vector<2x128xf32>, i32 -> vector<2x128xf32>
    %35 = vector.shape_cast %31 : vector<2x128xf32> to vector<2x1x128xf32>
    %36 = vector.shape_cast %33 : vector<4x128xf32> to vector<1x4x128xf32>
    %37 = vector.broadcast %35 : vector<2x1x128xf32> to vector<2x4x128xf32>
    %38 = vector.broadcast %36 : vector<1x4x128xf32> to vector<2x4x128xf32>
    %39 = arith.mulf %37, %38 : vector<2x4x128xf32>
    %40 = vector.shape_cast %34 : vector<2x128xf32> to vector<2x1x128xf32>
    %41 = vector.shape_cast %33 : vector<4x128xf32> to vector<1x4x128xf32>
    %42 = vector.broadcast %40 : vector<2x1x128xf32> to vector<2x4x128xf32>
    %43 = vector.broadcast %41 : vector<1x4x128xf32> to vector<2x4x128xf32>
    %44 = arith.mulf %42, %43 : vector<2x4x128xf32>
    %c64_i32_23 = arith.constant 64 : i32
    %45 = tpu.dynamic_rotate %39 by %c64_i32_23 dim 2 : vector<2x4x128xf32>, i32 -> vector<2x4x128xf32>
    %c64_i32_24 = arith.constant 64 : i32
    %46 = tpu.dynamic_rotate %44 by %c64_i32_24 dim 2 : vector<2x4x128xf32>, i32 -> vector<2x4x128xf32>
    %c0_25 = arith.constant 0 : index
    %c0_26 = arith.constant 0 : index
    %c0_27 = arith.constant 0 : index
    %47 = vector.load %arg5[%c0_25, %c0_26, %c0_27] : memref<2x4x128xf32, #tpu.memory_space<vmem>>, vector<2x4x128xf32>
    %48 = arith.subf %39, %45 : vector<2x4x128xf32>
    %49 = arith.addf %44, %46 : vector<2x4x128xf32>
    %50 = vector.shape_cast %2 : vector<1x1x128xi1> to vector<1x1x128xi1>
    %51 = vector.broadcast %50 : vector<1x1x128xi1> to vector<2x4x128xi1>
    %52 = arith.select %51, %48, %49 : vector<2x4x128xi1>, vector<2x4x128xf32>
    %53 = arith.addf %47, %52 : vector<2x4x128xf32>
    %c0_28 = arith.constant 0 : index
    %c0_29 = arith.constant 0 : index
    %c0_30 = arith.constant 0 : index
    %54 = vector.load %arg5[%c0_28, %c0_29, %c0_30] : memref<2x4x128xf32, #tpu.memory_space<vmem>>, vector<2x4x128xf32>
    tpu.vector_store %arg5[%c0_28, %c0_29, %c0_30], %53 {strides = array<i32>} : memref<2x4x128xf32, #tpu.memory_space<vmem>>, vector<2x4x128xf32>,
    %c2 = arith.constant 2 : index
    %c0_31 = arith.constant 0 : index
    %c0_32 = arith.constant 0 : index
    %55 = vector.load %arg3[%c2, %c0_31, %c0_32] : memref<4x2x128xf32, #tpu.memory_space<vmem>>, vector<1x2x128xf32>
    %56 = vector.shape_cast %55 : vector<1x2x128xf32> to vector<2x128xf32>
    %c2_33 = arith.constant 2 : index
    %c0_34 = arith.constant 0 : index
    %c0_35 = arith.constant 0 : index
    %57 = vector.load %arg4[%c2_33, %c0_34, %c0_35] : memref<4x4x128xf32, #tpu.memory_space<vmem>>, vector<1x4x128xf32>
    %58 = vector.shape_cast %57 : vector<1x4x128xf32> to vector<4x128xf32>
    %c64_i32_36 = arith.constant 64 : i32
    %59 = tpu.dynamic_rotate %56 by %c64_i32_36 dim 1 : vector<2x128xf32>, i32 -> vector<2x128xf32>
    %60 = vector.shape_cast %56 : vector<2x128xf32> to vector<2x1x128xf32>
    %61 = vector.shape_cast %58 : vector<4x128xf32> to vector<1x4x128xf32>
    %62 = vector.broadcast %60 : vector<2x1x128xf32> to vector<2x4x128xf32>
    %63 = vector.broadcast %61 : vector<1x4x128xf32> to vector<2x4x128xf32>
    %64 = arith.mulf %62, %63 : vector<2x4x128xf32>
    %65 = vector.shape_cast %59 : vector<2x128xf32> to vector<2x1x128xf32>
    %66 = vector.shape_cast %58 : vector<4x128xf32> to vector<1x4x128xf32>
    %67 = vector.broadcast %65 : vector<2x1x128xf32> to vector<2x4x128xf32>
    %68 = vector.broadcast %66 : vector<1x4x128xf32> to vector<2x4x128xf32>
    %69 = arith.mulf %67, %68 : vector<2x4x128xf32>
    %c64_i32_37 = arith.constant 64 : i32
    %70 = tpu.dynamic_rotate %64 by %c64_i32_37 dim 2 : vector<2x4x128xf32>, i32 -> vector<2x4x128xf32>
    %c64_i32_38 = arith.constant 64 : i32
    %71 = tpu.dynamic_rotate %69 by %c64_i32_38 dim 2 : vector<2x4x128xf32>, i32 -> vector<2x4x128xf32>
    %c0_39 = arith.constant 0 : index
    %c0_40 = arith.constant 0 : index
    %c0_41 = arith.constant 0 : index
    %72 = vector.load %arg5[%c0_39, %c0_40, %c0_41] : memref<2x4x128xf32, #tpu.memory_space<vmem>>, vector<2x4x128xf32>
    %73 = arith.subf %64, %70 : vector<2x4x128xf32>
    %74 = arith.addf %69, %71 : vector<2x4x128xf32>
    %75 = vector.shape_cast %2 : vector<1x1x128xi1> to vector<1x1x128xi1>
    %76 = vector.broadcast %75 : vector<1x1x128xi1> to vector<2x4x128xi1>
    %77 = arith.select %76, %73, %74 : vector<2x4x128xi1>, vector<2x4x128xf32>
    %78 = arith.addf %72, %77 : vector<2x4x128xf32>
    %c0_42 = arith.constant 0 : index
    %c0_43 = arith.constant 0 : index
    %c0_44 = arith.constant 0 : index
    %79 = vector.load %arg5[%c0_42, %c0_43, %c0_44] : memref<2x4x128xf32, #tpu.memory_space<vmem>>, vector<2x4x128xf32>
    tpu.vector_store %arg5[%c0_42, %c0_43, %c0_44], %78 {strides = array<i32>} : memref<2x4x128xf32, #tpu.memory_space<vmem>>, vector<2x4x128xf32>,
    %c3 = arith.constant 3 : index
    %c0_45 = arith.constant 0 : index
    %c0_46 = arith.constant 0 : index
    %80 = vector.load %arg3[%c3, %c0_45, %c0_46] : memref<4x2x128xf32, #tpu.memory_space<vmem>>, vector<1x2x128xf32>
    %81 = vector.shape_cast %80 : vector<1x2x128xf32> to vector<2x128xf32>
    %c3_47 = arith.constant 3 : index
    %c0_48 = arith.constant 0 : index
    %c0_49 = arith.constant 0 : index
    %82 = vector.load %arg4[%c3_47, %c0_48, %c0_49] : memref<4x4x128xf32, #tpu.memory_space<vmem>>, vector<1x4x128xf32>
    %83 = vector.shape_cast %82 : vector<1x4x128xf32> to vector<4x128xf32>
    %c64_i32_50 = arith.constant 64 : i32
    %84 = tpu.dynamic_rotate %81 by %c64_i32_50 dim 1 : vector<2x128xf32>, i32 -> vector<2x128xf32>
    %85 = vector.shape_cast %81 : vector<2x128xf32> to vector<2x1x128xf32>
    %86 = vector.shape_cast %83 : vector<4x128xf32> to vector<1x4x128xf32>
    %87 = vector.broadcast %85 : vector<2x1x128xf32> to vector<2x4x128xf32>
    %88 = vector.broadcast %86 : vector<1x4x128xf32> to vector<2x4x128xf32>
    %89 = arith.mulf %87, %88 : vector<2x4x128xf32>
    %90 = vector.shape_cast %84 : vector<2x128xf32> to vector<2x1x128xf32>
    %91 = vector.shape_cast %83 : vector<4x128xf32> to vector<1x4x128xf32>
    %92 = vector.broadcast %90 : vector<2x1x128xf32> to vector<2x4x128xf32>
    %93 = vector.broadcast %91 : vector<1x4x128xf32> to vector<2x4x128xf32>
    %94 = arith.mulf %92, %93 : vector<2x4x128xf32>
    %c64_i32_51 = arith.constant 64 : i32
    %95 = tpu.dynamic_rotate %89 by %c64_i32_51 dim 2 : vector<2x4x128xf32>, i32 -> vector<2x4x128xf32>
    %c64_i32_52 = arith.constant 64 : i32
    %96 = tpu.dynamic_rotate %94 by %c64_i32_52 dim 2 : vector<2x4x128xf32>, i32 -> vector<2x4x128xf32>
    %c0_53 = arith.constant 0 : index
    %c0_54 = arith.constant 0 : index
    %c0_55 = arith.constant 0 : index
    %97 = vector.load %arg5[%c0_53, %c0_54, %c0_55] : memref<2x4x128xf32, #tpu.memory_space<vmem>>, vector<2x4x128xf32>
    %98 = arith.subf %89, %95 : vector<2x4x128xf32>
    %99 = arith.addf %94, %96 : vector<2x4x128xf32>
    %100 = vector.shape_cast %2 : vector<1x1x128xi1> to vector<1x1x128xi1>
    %101 = vector.broadcast %100 : vector<1x1x128xi1> to vector<2x4x128xi1>
    %102 = arith.select %101, %98, %99 : vector<2x4x128xi1>, vector<2x4x128xf32>
    %103 = arith.addf %97, %102 : vector<2x4x128xf32>
    %c0_56 = arith.constant 0 : index
    %c0_57 = arith.constant 0 : index
    %c0_58 = arith.constant 0 : index
    %104 = vector.load %arg5[%c0_56, %c0_57, %c0_58] : memref<2x4x128xf32, #tpu.memory_space<vmem>>, vector<2x4x128xf32>
    tpu.vector_store %arg5[%c0_56, %c0_57, %c0_58], %103 {strides = array<i32>} : memref<2x4x128xf32, #tpu.memory_space<vmem>>, vector<2x4x128xf32>,
    %c0_59 = arith.constant 0 : index
    %c0_60 = arith.constant 0 : index
    %105 = vector.load %arg2[%c0_59, %c0_60] : memref<2x128xf32, #tpu.memory_space<vmem>>, vector<2x128xf32>
    %c64_i32_61 = arith.constant 64 : i32
    %106 = tpu.dynamic_rotate %105 by %c64_i32_61 dim 1 : vector<2x128xf32>, i32 -> vector<2x128xf32>
    %107 = vector.shape_cast %105 : vector<2x128xf32> to vector<2x1x128xf32>
    %108 = vector.shape_cast %106 : vector<2x128xf32> to vector<2x1x128xf32>
    %c0_62 = arith.constant 0 : index
    %c0_63 = arith.constant 0 : index
    %c0_64 = arith.constant 0 : index
    %109 = vector.load %arg5[%c0_62, %c0_63, %c0_64] : memref<2x4x128xf32, #tpu.memory_space<vmem>>, vector<2x4x128xf32>
    %c64_i32_65 = arith.constant 64 : i32
    %110 = tpu.dynamic_rotate %109 by %c64_i32_65 dim 2 : vector<2x4x128xf32>, i32 -> vector<2x4x128xf32>
    %111 = vector.broadcast %107 : vector<2x1x128xf32> to vector<2x4x128xf32>
    %112 = arith.mulf %109, %111 : vector<2x4x128xf32>
    %113 = vector.broadcast %108 : vector<2x1x128xf32> to vector<2x4x128xf32>
    %114 = arith.mulf %110, %113 : vector<2x4x128xf32>
    %115 = arith.subf %112, %114 : vector<2x4x128xf32>
    %116 = vector.broadcast %107 : vector<2x1x128xf32> to vector<2x4x128xf32>
    %117 = arith.mulf %110, %116 : vector<2x4x128xf32>
    %118 = vector.broadcast %108 : vector<2x1x128xf32> to vector<2x4x128xf32>
    %119 = arith.mulf %109, %118 : vector<2x4x128xf32>
    %120 = arith.addf %117, %119 : vector<2x4x128xf32>
    %121 = vector.shape_cast %2 : vector<1x1x128xi1> to vector<1x1x128xi1>
    %122 = vector.broadcast %121 : vector<1x1x128xi1> to vector<2x4x128xi1>
    %123 = arith.select %122, %115, %120 : vector<2x4x128xi1>, vector<2x4x128xf32>
    %c0_66 = arith.constant 0 : index
    %c0_67 = arith.constant 0 : index
    %c0_68 = arith.constant 0 : index
    %124 = vector.load %arg5[%c0_66, %c0_67, %c0_68] : memref<2x4x128xf32, #tpu.memory_space<vmem>>, vector<2x4x128xf32>
    tpu.vector_store %arg5[%c0_66, %c0_67, %c0_68], %123 {strides = array<i32>} : memref<2x4x128xf32, #tpu.memory_space<vmem>>, vector<2x4x128xf32>,
    return
  }
  func.func @transform_0(%arg0: i32, %arg1: i32) -> (i32, i32) {
    %c0_i32 = arith.constant 0 : i32
    %c0_i32_0 = arith.constant 0 : i32
    return %arg0, %c0_i32 : i32, i32
  }
  func.func @transform_1(%arg0: i32, %arg1: i32) -> (i32, i32, i32) {
    %c0_i32 = arith.constant 0 : i32
    %c0_i32_0 = arith.constant 0 : i32
    %c0_i32_1 = arith.constant 0 : i32
    return %c0_i32, %arg0, %c0_i32_0 : i32, i32, i32
  }
  func.func @transform_2(%arg0: i32, %arg1: i32) -> (i32, i32, i32) {
    %c0_i32 = arith.constant 0 : i32
    %c0_i32_0 = arith.constant 0 : i32
    %c0_i32_1 = arith.constant 0 : i32
    return %c0_i32, %arg1, %c0_i32_0 : i32, i32, i32
  }
  func.func @transform_3(%arg0: i32, %arg1: i32) -> (i32, i32, i32) {
    %c0_i32 = arith.constant 0 : i32
    %c0_i32_0 = arith.constant 0 : i32
    return %arg0, %arg1, %c0_i32 : i32, i32, i32
  }
}

</mosaic_0001>

<llo_original>
// kernel: tpu_custom_call.1
$region0: #{tpu_custom_call.1}
  #allocation0 [shape = 'u32[]', space=smem, size = 0x4, offset = 0x4, fixed_abs, tag = 'smem constant byte address 0x4 - core index']
  #allocation1 [shape = 'u32[144,128]{1,0:T(1,128)}', space=vmem, size = 0x12000, scoped, tag = 'internal scratch']
  %s0 = inlined_call_operand.hbm [shape: f32[2,128], index: 0, kind: input, shape index: {}]
  %s1 = inlined_call_operand.hbm [shape: f32[4,2,128], index: 1, kind: input, shape index: {}]
  %s2 = inlined_call_operand.hbm [shape: f32[4,4,128], index: 2, kind: input, shape index: {}]
  %s3 = inlined_call_operand.hbm [shape: f32[2,4,128], index: 3, kind: output, shape index: {}]
  %s4 = sld [smem:[#allocation0]]
  $region34: #{tpu_custom_call.1} parent=0
    _
  %s6 = ssub.s32 1, %s4
  %s7 = scalar_select 0, %s6, %s4
  $region1: #{tpu_custom_call.1} parent=0
    #allocation2 [shape = 'u8[1024]{0}', space=vmem, size = 0x400, scoped, tag = 'input window, operand 0, single buffered']
    #allocation3 [shape = 's32[1]{0}', space=sflag, size = 0x4, scoped, tag = 'scoped memory for tpu_custom_call.1']
    #allocation4 [shape = 's32[1]{0}', space=sflag, size = 0x4, scoped, tag = 'scoped memory for tpu_custom_call.1']
    #allocation5 [shape = 'u8[4096]{0}', space=vmem, size = 0x1000, scoped, tag = 'input window, operand 1, single buffered']
    #allocation6 [shape = 's32[1]{0}', space=sflag, size = 0x4, scoped, tag = 'scoped memory for tpu_custom_call.1']
    #allocation7 [shape = 'u8[8192]{0}', space=vmem, size = 0x2000, scoped, tag = 'input window, operand 2, single buffered']
    #allocation8 [shape = 'u8[4096]{0}', space=vmem, size = 0x1000, scoped, tag = 'output window, operand 0, single buffered']
    %8 = vsyncpa [#allocation3], 0
    %9 = vsyncpa [#allocation6], 0
    %10 = vsyncpa [#allocation4], 0
    // Predicated region
    $region2: #{tpu_custom_call.1} parent=1 // pred_check
      _
    $region3: #{tpu_custom_call.1} parent=1 // pred_check_branch
      %12 = sbr.rel (0) target = $region5
    $region4: #{tpu_custom_call.1} parent=1 // pred_region
      %s14 = ssub.s32 32, 32
      %15 = vsyncadd [#allocation3], %s14
      %s17 = sshll.u32 [#allocation2], 4
      %s18 = int_to_ptr.vmem [resolvable:$true] %s17
      %20 = dma.hbm_to_vmem [thread:$0]  %s0, 32, %s18, [#allocation3]
    $region5: #{tpu_custom_call.1} parent=1 // pred_fallthru
      _
    // Predicated region
    $region6: #{tpu_custom_call.1} parent=1 // pred_check
      _
    $region7: #{tpu_custom_call.1} parent=1 // pred_check_branch
      %22 = sbr.rel (0) target = $region9
    $region8: #{tpu_custom_call.1} parent=1 // pred_region
      %s24 = ssub.s32 128, 128
      %25 = vsyncadd [#allocation6], %s24
      %s26 = sshll.u32 [#allocation5], 4
      %s27 = int_to_ptr.vmem [resolvable:$true] %s26
      %32 = dma.hbm_to_vmem [thread:$0]  %s1, 128, %s27, [#allocation6], 32, 32, 2
    $region9: #{tpu_custom_call.1} parent=1 // pred_fallthru
      _
    // Predicated region
    $region10: #{tpu_custom_call.1} parent=1 // pred_check
      _
    $region11: #{tpu_custom_call.1} parent=1 // pred_check_branch
      %34 = sbr.rel (0) target = $region13
    $region12: #{tpu_custom_call.1} parent=1 // pred_region
      %s36 = ssub.s32 256, 256
      %37 = vsyncadd [#allocation6], %s36
      %s38 = sshll.u32 [#allocation7], 4
      %s39 = int_to_ptr.vmem [resolvable:$true] %s38
      %44 = dma.hbm_to_vmem [thread:$0]  %s2, 256, %s39, [#allocation6], 64, 64, 4
    $region13: #{tpu_custom_call.1} parent=1 // pred_fallthru
      _
    // Predicated region
    $region14: #{tpu_custom_call.1} parent=1 // pred_check
      _
    $region15: #{tpu_custom_call.1} parent=1 // pred_check_branch
      %46 = sbr.rel (0) target = $region17
    $region16: #{tpu_custom_call.1} parent=1 // pred_region
      %47 = dma.done [#allocation3], 32
    $region17: #{tpu_custom_call.1} parent=1 // pred_fallthru
      _
    // Predicated region
    $region18: #{tpu_custom_call.1} parent=1 // pred_check
      _
    $region19: #{tpu_custom_call.1} parent=1 // pred_check_branch
      %49 = sbr.rel (0) target = $region21
    $region20: #{tpu_custom_call.1} parent=1 // pred_region
      %50 = dma.done [#allocation6], 128
    $region21: #{tpu_custom_call.1} parent=1 // pred_fallthru
      _
    // Predicated region
    $region22: #{tpu_custom_call.1} parent=1 // pred_check
      _
    $region23: #{tpu_custom_call.1} parent=1 // pred_check_branch
      %52 = sbr.rel (0) target = $region25
    $region24: #{tpu_custom_call.1} parent=1 // pred_region
      %53 = dma.done [#allocation6], 256
    $region25: #{tpu_custom_call.1} parent=1 // pred_fallthru
      _
    %v54 = vlaneseq
    %v55 = vand.u32 %v54, 127
    %vm56 = vcmp.lt.s32.totalorder %v55, 64
    %57 = vst [vmem:[#allocation8] sm:$0xf] 0.0
    %58 = vst [vmem:[#allocation8 + $0x4] sm:$0xf] 0.0
    %v59 = vld [vmem:[#allocation5] sm:$0x3]
    %v60 = vld [vmem:[#allocation7] sm:$0xf]
    %61 = vrot.lane.b32.xlu0 %v59, 64
    %v62 = vpop.permute.xlu0 %61
    %v65 = vunpack.c.l.s4 1966171168
    %v66 = vunpack.c.0.s8 %v65
    %v67 = vlaneseq
    %v68 = vshrl.u32 %v67, 7
    %v69 = vsub.s32 %v66, %v68
    %v70 = vrot.slane %v59, %v69
    %v71 = vcombine.high %v70, %v70
    %v73 = vunpack.c.l.s4 1966171168
    %v74 = vunpack.c.0.s8 %v73
    %v75 = vlaneseq
    %v76 = vshrl.u32 %v75, 7
    %v77 = vsub.s32 %v74, %v76
    %v78 = vrot.slane %v70, %v77
    %v80 = vunpack.c.l.s4 1966171168
    %v81 = vunpack.c.0.s8 %v80
    %v82 = vlaneseq
    %v83 = vshrl.u32 %v82, 7
    %v84 = vsub.s32 %v81, %v83
    %v85 = vrot.slane %v71, %v84
    %v86 = vlaneseq
    %v87 = vshrl.u32 %v86, 7
    %v88 = vsub.s32 0, %v87
    %v89 = vrot.slane %v78, %v88
    %v90 = vlaneseq
    %v91 = vshrl.u32 %v90, 7
    %v92 = vsub.s32 0, %v91
    %v93 = vrot.slane %v85, %v92
    %v96 = vmul.f32 %v89, %v60
    %v97 = vmul.f32 %v93, %v60
    %v100 = vunpack.c.l.s4 1966171168
    %v101 = vunpack.c.0.s8 %v100
    %v102 = vlaneseq
    %v103 = vshrl.u32 %v102, 7
    %v104 = vsub.s32 %v101, %v103
    %v105 = vrot.slane %v62, %v104
    %v106 = vcombine.high %v105, %v105
    %v108 = vunpack.c.l.s4 1966171168
    %v109 = vunpack.c.0.s8 %v108
    %v110 = vlaneseq
    %v111 = vshrl.u32 %v110, 7
    %v112 = vsub.s32 %v109, %v111
    %v113 = vrot.slane %v105, %v112
    %v115 = vunpack.c.l.s4 1966171168
    %v116 = vunpack.c.0.s8 %v115
    %v117 = vlaneseq
    %v118 = vshrl.u32 %v117, 7
    %v119 = vsub.s32 %v116, %v118
    %v120 = vrot.slane %v106, %v119
    %v121 = vlaneseq
    %v122 = vshrl.u32 %v121, 7
    %v123 = vsub.s32 0, %v122
    %v124 = vrot.slane %v113, %v123
    %v125 = vlaneseq
    %v126 = vshrl.u32 %v125, 7
    %v127 = vsub.s32 0, %v126
    %v128 = vrot.slane %v120, %v127
    %v131 = vmul.f32 %v124, %v60
    %v132 = vmul.f32 %v128, %v60
    %133 = vrot.lane.b32.xlu0 %v96, 64
    %v134 = vpop.permute.xlu0 %133
    %135 = vrot.lane.b32.xlu0 %v97, 64
    %v136 = vpop.permute.xlu0 %135
    %137 = vrot.lane.b32.xlu0 %v131, 64
    %v138 = vpop.permute.xlu0 %137
    %139 = vrot.lane.b32.xlu0 %v132, 64
    %v140 = vpop.permute.xlu0 %139
    %v141 = vld [vmem:[#allocation8] sm:$0xf]
    %v142 = vld [vmem:[#allocation8 + $0x4] sm:$0xf]
    %v143 = vsub.f32 %v96, %v134
    %v144 = vsub.f32 %v97, %v136
    %v145 = vadd.f32 %v131, %v138
    %v146 = vadd.f32 %v132, %v140
    %v147 = vsel %vm56, 1, 0
    %vm148 = vcmp.eq.s32.totalorder %v147, 1
    %v149 = vsel %vm148, %v143, %v145
    %v150 = vsel %vm148, %v144, %v146
    %v151 = vadd.f32 %v141, %v149
    %v152 = vadd.f32 %v142, %v150
    %153 = vst [vmem:[#allocation8] sm:$0xf] %v151
    %154 = vst [vmem:[#allocation8 + $0x4] sm:$0xf] %v152
    %s155 = scalar_lea.vmem [#allocation5], 2
    %v156 = vld [vmem:[%s155] sm:$0x3]
    %s157 = scalar_lea.vmem [#allocation7], 4
    %v158 = vld [vmem:[%s157] sm:$0xf]
    %159 = vrot.lane.b32.xlu0 %v156, 64
    %v160 = vpop.permute.xlu0 %159
    %v163 = vunpack.c.l.s4 1966171168
    %v164 = vunpack.c.0.s8 %v163
    %v165 = vlaneseq
    %v166 = vshrl.u32 %v165, 7
    %v167 = vsub.s32 %v164, %v166
    %v168 = vrot.slane %v156, %v167
    %v169 = vcombine.high %v168, %v168
    %v171 = vunpack.c.l.s4 1966171168
    %v172 = vunpack.c.0.s8 %v171
    %v173 = vlaneseq
    %v174 = vshrl.u32 %v173, 7
    %v175 = vsub.s32 %v172, %v174
    %v176 = vrot.slane %v168, %v175
    %v178 = vunpack.c.l.s4 1966171168
    %v179 = vunpack.c.0.s8 %v178
    %v180 = vlaneseq
    %v181 = vshrl.u32 %v180, 7
    %v182 = vsub.s32 %v179, %v181
    %v183 = vrot.slane %v169, %v182
    %v184 = vlaneseq
    %v185 = vshrl.u32 %v184, 7
    %v186 = vsub.s32 0, %v185
    %v187 = vrot.slane %v176, %v186
    %v188 = vlaneseq
    %v189 = vshrl.u32 %v188, 7
    %v190 = vsub.s32 0, %v189
    %v191 = vrot.slane %v183, %v190
    %v194 = vmul.f32 %v187, %v158
    %v195 = vmul.f32 %v191, %v158
    %v198 = vunpack.c.l.s4 1966171168
    %v199 = vunpack.c.0.s8 %v198
    %v200 = vlaneseq
    %v201 = vshrl.u32 %v200, 7
    %v202 = vsub.s32 %v199, %v201
    %v203 = vrot.slane %v160, %v202
    %v204 = vcombine.high %v203, %v203
    %v206 = vunpack.c.l.s4 1966171168
    %v207 = vunpack.c.0.s8 %v206
    %v208 = vlaneseq
    %v209 = vshrl.u32 %v208, 7
    %v210 = vsub.s32 %v207, %v209
    %v211 = vrot.slane %v203, %v210
    %v213 = vunpack.c.l.s4 1966171168
    %v214 = vunpack.c.0.s8 %v213
    %v215 = vlaneseq
    %v216 = vshrl.u32 %v215, 7
    %v217 = vsub.s32 %v214, %v216
    %v218 = vrot.slane %v204, %v217
    %v219 = vlaneseq
    %v220 = vshrl.u32 %v219, 7
    %v221 = vsub.s32 0, %v220
    %v222 = vrot.slane %v211, %v221
    %v223 = vlaneseq
    %v224 = vshrl.u32 %v223, 7
    %v225 = vsub.s32 0, %v224
    %v226 = vrot.slane %v218, %v225
    %v229 = vmul.f32 %v222, %v158
    %v230 = vmul.f32 %v226, %v158
    %231 = vrot.lane.b32.xlu0 %v194, 64
    %v232 = vpop.permute.xlu0 %231
    %233 = vrot.lane.b32.xlu0 %v195, 64
    %v234 = vpop.permute.xlu0 %233
    %235 = vrot.lane.b32.xlu0 %v229, 64
    %v236 = vpop.permute.xlu0 %235
    %237 = vrot.lane.b32.xlu0 %v230, 64
    %v238 = vpop.permute.xlu0 %237
    %v239 = vld [vmem:[#allocation8] sm:$0xf]
    %v240 = vld [vmem:[#allocation8 + $0x4] sm:$0xf]
    %v241 = vsub.f32 %v194, %v232
    %v242 = vsub.f32 %v195, %v234
    %v243 = vadd.f32 %v229, %v236
    %v244 = vadd.f32 %v230, %v238
    %v245 = vsel %vm148, %v241, %v243
    %v246 = vsel %vm148, %v242, %v244
    %v247 = vadd.f32 %v239, %v245
    %v248 = vadd.f32 %v240, %v246
    %249 = vst [vmem:[#allocation8] sm:$0xf] %v247
    %250 = vst [vmem:[#allocation8 + $0x4] sm:$0xf] %v248
    %s251 = scalar_lea.vmem [#allocation5], 4
    %v252 = vld [vmem:[%s251] sm:$0x3]
    %s253 = scalar_lea.vmem [#allocation7], 8
    %v254 = vld [vmem:[%s253] sm:$0xf]
    %255 = vrot.lane.b32.xlu0 %v252, 64
    %v256 = vpop.permute.xlu0 %255
    %v259 = vunpack.c.l.s4 1966171168
    %v260 = vunpack.c.0.s8 %v259
    %v261 = vlaneseq
    %v262 = vshrl.u32 %v261, 7
    %v263 = vsub.s32 %v260, %v262
    %v264 = vrot.slane %v252, %v263
    %v265 = vcombine.high %v264, %v264
    %v267 = vunpack.c.l.s4 1966171168
    %v268 = vunpack.c.0.s8 %v267
    %v269 = vlaneseq
    %v270 = vshrl.u32 %v269, 7
    %v271 = vsub.s32 %v268, %v270
    %v272 = vrot.slane %v264, %v271
    %v274 = vunpack.c.l.s4 1966171168
    %v275 = vunpack.c.0.s8 %v274
    %v276 = vlaneseq
    %v277 = vshrl.u32 %v276, 7
    %v278 = vsub.s32 %v275, %v277
    %v279 = vrot.slane %v265, %v278
    %v280 = vlaneseq
    %v281 = vshrl.u32 %v280, 7
    %v282 = vsub.s32 0, %v281
    %v283 = vrot.slane %v272, %v282
    %v284 = vlaneseq
    %v285 = vshrl.u32 %v284, 7
    %v286 = vsub.s32 0, %v285
    %v287 = vrot.slane %v279, %v286
    %v290 = vmul.f32 %v283, %v254
    %v291 = vmul.f32 %v287, %v254
    %v294 = vunpack.c.l.s4 1966171168
    %v295 = vunpack.c.0.s8 %v294
    %v296 = vlaneseq
    %v297 = vshrl.u32 %v296, 7
    %v298 = vsub.s32 %v295, %v297
    %v299 = vrot.slane %v256, %v298
    %v300 = vcombine.high %v299, %v299
    %v302 = vunpack.c.l.s4 1966171168
    %v303 = vunpack.c.0.s8 %v302
    %v304 = vlaneseq
    %v305 = vshrl.u32 %v304, 7
    %v306 = vsub.s32 %v303, %v305
    %v307 = vrot.slane %v299, %v306
    %v309 = vunpack.c.l.s4 1966171168
    %v310 = vunpack.c.0.s8 %v309
    %v311 = vlaneseq
    %v312 = vshrl.u32 %v311, 7
    %v313 = vsub.s32 %v310, %v312
    %v314 = vrot.slane %v300, %v313
    %v315 = vlaneseq
    %v316 = vshrl.u32 %v315, 7
    %v317 = vsub.s32 0, %v316
    %v318 = vrot.slane %v307, %v317
    %v319 = vlaneseq
    %v320 = vshrl.u32 %v319, 7
    %v321 = vsub.s32 0, %v320
    %v322 = vrot.slane %v314, %v321
    %v325 = vmul.f32 %v318, %v254
    %v326 = vmul.f32 %v322, %v254
    %327 = vrot.lane.b32.xlu0 %v290, 64
    %v328 = vpop.permute.xlu0 %327
    %329 = vrot.lane.b32.xlu0 %v291, 64
    %v330 = vpop.permute.xlu0 %329
    %331 = vrot.lane.b32.xlu0 %v325, 64
    %v332 = vpop.permute.xlu0 %331
    %333 = vrot.lane.b32.xlu0 %v326, 64
    %v334 = vpop.permute.xlu0 %333
    %v335 = vld [vmem:[#allocation8] sm:$0xf]
    %v336 = vld [vmem:[#allocation8 + $0x4] sm:$0xf]
    %v337 = vsub.f32 %v290, %v328
    %v338 = vsub.f32 %v291, %v330
    %v339 = vadd.f32 %v325, %v332
    %v340 = vadd.f32 %v326, %v334
    %v341 = vsel %vm148, %v337, %v339
    %v342 = vsel %vm148, %v338, %v340
    %v343 = vadd.f32 %v335, %v341
    %v344 = vadd.f32 %v336, %v342
    %345 = vst [vmem:[#allocation8] sm:$0xf] %v343
    %346 = vst [vmem:[#allocation8 + $0x4] sm:$0xf] %v344
    %s347 = scalar_lea.vmem [#allocation5], 6
    %v348 = vld [vmem:[%s347] sm:$0x3]
    %s349 = scalar_lea.vmem [#allocation7], 12
    %v350 = vld [vmem:[%s349] sm:$0xf]
    %351 = vrot.lane.b32.xlu0 %v348, 64
    %v352 = vpop.permute.xlu0 %351
    %v355 = vunpack.c.l.s4 1966171168
    %v356 = vunpack.c.0.s8 %v355
    %v357 = vlaneseq
    %v358 = vshrl.u32 %v357, 7
    %v359 = vsub.s32 %v356, %v358
    %v360 = vrot.slane %v348, %v359
    %v361 = vcombine.high %v360, %v360
    %v363 = vunpack.c.l.s4 1966171168
    %v364 = vunpack.c.0.s8 %v363
    %v365 = vlaneseq
    %v366 = vshrl.u32 %v365, 7
    %v367 = vsub.s32 %v364, %v366
    %v368 = vrot.slane %v360, %v367
    %v370 = vunpack.c.l.s4 1966171168
    %v371 = vunpack.c.0.s8 %v370
    %v372 = vlaneseq
    %v373 = vshrl.u32 %v372, 7
    %v374 = vsub.s32 %v371, %v373
    %v375 = vrot.slane %v361, %v374
    %v376 = vlaneseq
    %v377 = vshrl.u32 %v376, 7
    %v378 = vsub.s32 0, %v377
    %v379 = vrot.slane %v368, %v378
    %v380 = vlaneseq
    %v381 = vshrl.u32 %v380, 7
    %v382 = vsub.s32 0, %v381
    %v383 = vrot.slane %v375, %v382
    %v386 = vmul.f32 %v379, %v350
    %v387 = vmul.f32 %v383, %v350
    %v390 = vunpack.c.l.s4 1966171168
    %v391 = vunpack.c.0.s8 %v390
    %v392 = vlaneseq
    %v393 = vshrl.u32 %v392, 7
    %v394 = vsub.s32 %v391, %v393
    %v395 = vrot.slane %v352, %v394
    %v396 = vcombine.high %v395, %v395
    %v398 = vunpack.c.l.s4 1966171168
    %v399 = vunpack.c.0.s8 %v398
    %v400 = vlaneseq
    %v401 = vshrl.u32 %v400, 7
    %v402 = vsub.s32 %v399, %v401
    %v403 = vrot.slane %v395, %v402
    %v405 = vunpack.c.l.s4 1966171168
    %v406 = vunpack.c.0.s8 %v405
    %v407 = vlaneseq
    %v408 = vshrl.u32 %v407, 7
    %v409 = vsub.s32 %v406, %v408
    %v410 = vrot.slane %v396, %v409
    %v411 = vlaneseq
    %v412 = vshrl.u32 %v411, 7
    %v413 = vsub.s32 0, %v412
    %v414 = vrot.slane %v403, %v413
    %v415 = vlaneseq
    %v416 = vshrl.u32 %v415, 7
    %v417 = vsub.s32 0, %v416
    %v418 = vrot.slane %v410, %v417
    %v421 = vmul.f32 %v414, %v350
    %v422 = vmul.f32 %v418, %v350
    %423 = vrot.lane.b32.xlu0 %v386, 64
    %v424 = vpop.permute.xlu0 %423
    %425 = vrot.lane.b32.xlu0 %v387, 64
    %v426 = vpop.permute.xlu0 %425
    %427 = vrot.lane.b32.xlu0 %v421, 64
    %v428 = vpop.permute.xlu0 %427
    %429 = vrot.lane.b32.xlu0 %v422, 64
    %v430 = vpop.permute.xlu0 %429
    %v431 = vld [vmem:[#allocation8] sm:$0xf]
    %v432 = vld [vmem:[#allocation8 + $0x4] sm:$0xf]
    %v433 = vsub.f32 %v386, %v424
    %v434 = vsub.f32 %v387, %v426
    %v435 = vadd.f32 %v421, %v428
    %v436 = vadd.f32 %v422, %v430
    %v437 = vsel %vm148, %v433, %v435
    %v438 = vsel %vm148, %v434, %v436
    %v439 = vadd.f32 %v431, %v437
    %v440 = vadd.f32 %v432, %v438
    %441 = vst [vmem:[#allocation8] sm:$0xf] %v439
    %442 = vst [vmem:[#allocation8 + $0x4] sm:$0xf] %v440
    %v443 = vld [vmem:[#allocation2] sm:$0x3]
    %444 = vrot.lane.b32.xlu0 %v443, 64
    %v445 = vpop.permute.xlu0 %444
    %v448 = vunpack.c.l.s4 1966171168
    %v449 = vunpack.c.0.s8 %v448
    %v450 = vlaneseq
    %v451 = vshrl.u32 %v450, 7
    %v452 = vsub.s32 %v449, %v451
    %v453 = vrot.slane %v443, %v452
    %v454 = vcombine.high %v453, %v453
    %v456 = vunpack.c.l.s4 1966171168
    %v457 = vunpack.c.0.s8 %v456
    %v458 = vlaneseq
    %v459 = vshrl.u32 %v458, 7
    %v460 = vsub.s32 %v457, %v459
    %v461 = vrot.slane %v453, %v460
    %v463 = vunpack.c.l.s4 1966171168
    %v464 = vunpack.c.0.s8 %v463
    %v465 = vlaneseq
    %v466 = vshrl.u32 %v465, 7
    %v467 = vsub.s32 %v464, %v466
    %v468 = vrot.slane %v454, %v467
    %v471 = vunpack.c.l.s4 1966171168
    %v472 = vunpack.c.0.s8 %v471
    %v473 = vlaneseq
    %v474 = vshrl.u32 %v473, 7
    %v475 = vsub.s32 %v472, %v474
    %v476 = vrot.slane %v445, %v475
    %v477 = vcombine.high %v476, %v476
    %v479 = vunpack.c.l.s4 1966171168
    %v480 = vunpack.c.0.s8 %v479
    %v481 = vlaneseq
    %v482 = vshrl.u32 %v481, 7
    %v483 = vsub.s32 %v480, %v482
    %v484 = vrot.slane %v476, %v483
    %v486 = vunpack.c.l.s4 1966171168
    %v487 = vunpack.c.0.s8 %v486
    %v488 = vlaneseq
    %v489 = vshrl.u32 %v488, 7
    %v490 = vsub.s32 %v487, %v489
    %v491 = vrot.slane %v477, %v490
    %v492 = vld [vmem:[#allocation8] sm:$0xf]
    %v493 = vld [vmem:[#allocation8 + $0x4] sm:$0xf]
    %494 = vrot.lane.b32.xlu0 %v492, 64
    %v495 = vpop.permute.xlu0 %494
    %496 = vrot.lane.b32.xlu0 %v493, 64
    %v497 = vpop.permute.xlu0 %496
    %v498 = vlaneseq
    %v499 = vshrl.u32 %v498, 7
    %v500 = vsub.s32 0, %v499
    %v501 = vrot.slane %v461, %v500
    %v502 = vlaneseq
    %v503 = vshrl.u32 %v502, 7
    %v504 = vsub.s32 0, %v503
    %v505 = vrot.slane %v468, %v504
    %v508 = vmul.f32 %v492, %v501
    %v509 = vmul.f32 %v493, %v505
    %v510 = vlaneseq
    %v511 = vshrl.u32 %v510, 7
    %v512 = vsub.s32 0, %v511
    %v513 = vrot.slane %v484, %v512
    %v514 = vlaneseq
    %v515 = vshrl.u32 %v514, 7
    %v516 = vsub.s32 0, %v515
    %v517 = vrot.slane %v491, %v516
    %v520 = vmul.f32 %v495, %v513
    %v521 = vmul.f32 %v497, %v517
    %v522 = vsub.f32 %v508, %v520
    %v523 = vsub.f32 %v509, %v521
    %v524 = vmul.f32 %v495, %v501
    %v525 = vmul.f32 %v497, %v505
    %v526 = vmul.f32 %v492, %v513
    %v527 = vmul.f32 %v493, %v517
    %v528 = vadd.f32 %v524, %v526
    %v529 = vadd.f32 %v525, %v527
    %v530 = vsel %vm148, %v522, %v528
    %v531 = vsel %vm148, %v523, %v529
    %532 = vst [vmem:[#allocation8] sm:$0xf] %v530
    %533 = vst [vmem:[#allocation8 + $0x4] sm:$0xf] %v531
    // Predicated region
    $region26: #{tpu_custom_call.1} parent=1 // pred_check
      _
    $region27: #{tpu_custom_call.1} parent=1 // pred_check_branch
      %535 = sbr.rel (0) target = $region29
    $region28: #{tpu_custom_call.1} parent=1 // pred_region
      %s537 = ssub.s32 128, 128
      %538 = vsyncadd [#allocation4], %s537
      %s539 = sshll.u32 [#allocation8], 4
      %s540 = int_to_ptr.vmem [resolvable:$true] %s539
      %545 = dma.vmem_to_hbm [thread:$0]  %s540, 128, %s3, [#allocation4], 64, 64, 4
    $region29: #{tpu_custom_call.1} parent=1 // pred_fallthru
      _
    // Predicated region
    $region30: #{tpu_custom_call.1} parent=1 // pred_check
      _
    $region31: #{tpu_custom_call.1} parent=1 // pred_check_branch
      %547 = sbr.rel (0) target = $region33
    $region32: #{tpu_custom_call.1} parent=1 // pred_region
      %548 = dma.done [#allocation4], 128
    $region33: #{tpu_custom_call.1} parent=1 // pred_fallthru
      _
    %549 = vsyncpa [#allocation3], 1
    %550 = vsyncpa [#allocation6], 1
    %551 = vsyncpa [#allocation4], 1

</llo_original>
